<compile_context>
chip_gen: v6e
topology: v6e:2x2x1
jax: 0.10.0
libtpu: 0.0.40
codegen_flags: <defaults>
</compile_context>

<pallas_src>
import math

import jax
import jax.numpy as jnp
from jax.experimental import pallas as pl
from jax.experimental.pallas import tpu as pltpu


# -----------------------------------------------------------------------------
# Pallas kernel: one (batch, i-row-tile) block per grid point
# -----------------------------------------------------------------------------
def _gil4_kernel(ni_ref, ea_ref, adj_ref,
                 wea_ref, wsend_ref, wrn_ref, be_ref, wna_ref, bn_ref,
                 out_ref):
    """Fused GraphInteractionLayer_4input forward, one (b, i-tile) block.

    ni_ref    : (N, Dni)       node_info = [node_code | node_attr], whole batch row
    ea_ref    : (TM*N, E)      edge_attr rows of this i-tile, flattened (i, j)
    adj_ref   : (TM, N)
    wea_ref   : (E, Ec)        edge weight, edge_attr slice
    wsend_ref : (Dni, Ec)      edge weight, sender slice
    wrn_ref   : (Dni, Ec+D1)   [edge weight receiver slice | node weight node_info slice]
    be_ref    : (1, Ec)        edge bias
    wna_ref   : (Ec, D1)       node weight, edge_agg slice
    bn_ref    : (1, D1)        node bias
    out_ref   : (TM, D1)       new node_code block
    """
    N, Dni = ni_ref.shape
    TM = adj_ref.shape[0]
    Ec = wea_ref.shape[1]
    f32 = jnp.float32

    i0 = pl.multiple_of(pl.program_id(1) * TM, TM)

    ni_full = ni_ref[...]                                     # (N, Dni)
    ni_tile = ni_ref[pl.ds(i0, TM), :]                        # (TM, Dni)

    # Sender contribution (varies with j -> needs all N rows).
    send = jnp.dot(ni_full, wsend_ref[...],
                   preferred_element_type=f32)                # (N, Ec)

    # Receiver contribution + node_processor node_info term share the same
    # (TM, Dni) LHS -> single fused MXU pass, lane-sliced afterwards.
    rn = jnp.dot(ni_tile, wrn_ref[...],
                 preferred_element_type=f32)                  # (TM, Ec+D1)
    recv = rn[:, :Ec]                                         # (TM, Ec)
    node_term = rn[:, Ec:]                                    # (TM, D1)

    # Per-edge attribute contribution for the whole (TM, N) edge block.
    e_attr = jnp.dot(ea_ref[...], wea_ref[...],
                     preferred_element_type=f32)              # (TM*N, Ec)

    e_lin = (e_attr.reshape(TM, N, Ec)
             + recv[:, None, :]                               # varies with i (receiver)
             + send[None, :, :]                               # varies with j (sender)
             + be_ref[0, :])
    # F.leaky_relu, default negative_slope = 0.01
    edge_code = jnp.where(e_lin > 0, e_lin, 0.01 * e_lin)

    # edge_agg[i, :] = sum_j edge_code[i, j, :] * adj[i, j]
    edge_agg = jnp.sum(edge_code * adj_ref[...][:, :, None], axis=1)   # (TM, Ec)

    out_ref[...] = (node_term
                    + jnp.dot(edge_agg, wna_ref[...], preferred_element_type=f32)
                    + bn_ref[0, :]).astype(out_ref.dtype)


# -----------------------------------------------------------------------------
# Wrapper
# -----------------------------------------------------------------------------
def _pick_i_tile(N, budget_bytes):
    """Largest i-tile TM (divisor of N; multiple of 8 unless TM == N) whose
    double-buffered, 128-lane-padded edge_attr VMEM block fits the budget."""
    per_row = 2 * 128 * 4          # 2 buffers x f32 rows padded to 128 lanes
    if N * N * per_row <= budget_bytes:
        return N
    best = None
    for tm in range(8, N, 8):
        if N % tm == 0 and tm * N * per_row <= budget_bytes:
            best = tm
    return best if best is not None else N


def graph_interaction_layer_4input(params, node_code, node_attr, edge_attr, adj):
    B, N, D1 = node_code.shape
    D2 = node_attr.shape[2]
    E = edge_attr.shape[3]
    Dni = D1 + D2

    we, be = params["we"], params["be"]      # (E + 2*Dni, Ec), (1, Ec)
    wn, bn = params["wn"], params["bn"]      # (Dni + Ec, D1), (1, D1)
    Ec = we.shape[1]

    # Wrapper-side (one-time, free) weight packing: split the edge weight by
    # input segment; fuse the receiver slice with the node_info slice of the
    # node weight (they share the same LHS rows inside the kernel).
    wea = we[:E]                                               # (E, Ec)
    wrn = jnp.concatenate([we[E:E + Dni], wn[:Dni]], axis=1)   # (Dni, Ec + D1)
    wsend = we[E + Dni:]                                       # (Dni, Ec)
    wna = wn[Dni:]                                             # (Ec, D1)

    node_info = jnp.concatenate([node_code, node_attr], axis=2)    # (B, N, Dni)
    ea_flat = edge_attr.reshape(B, N * N, E)    # free, row-major-preserving reshape

    # Keep the streamed edge_attr block well under the scoped VMEM limit so
    # double buffering always fits (v7x: 64 MiB physical vs 128 on v5e/v6e).
    tm = _pick_i_tile(N, budget_bytes=8 << 20)
    grid = (B, N // tm)

    return pl.pallas_call(
        _gil4_kernel,
        grid=grid,
        in_specs=[
            pl.BlockSpec((None, N, Dni), lambda b, it: (b, 0, 0)),        # node_info
            pl.BlockSpec((None, tm * N, E), lambda b, it: (b, it, 0)),    # edge_attr
            pl.BlockSpec((None, tm, N), lambda b, it: (b, it, 0)),        # adj
            pl.BlockSpec((E, Ec), lambda b, it: (0, 0)),                  # wea
            pl.BlockSpec((Dni, Ec), lambda b, it: (0, 0)),                # wsend
            pl.BlockSpec((Dni, Ec + D1), lambda b, it: (0, 0)),           # wrn
            pl.BlockSpec((1, Ec), lambda b, it: (0, 0)),                  # be
            pl.BlockSpec((Ec, D1), lambda b, it: (0, 0)),                 # wna
            pl.BlockSpec((1, D1), lambda b, it: (0, 0)),                  # bn
        ],
        out_specs=pl.BlockSpec((None, tm, D1), lambda b, it: (b, it, 0)),
        out_shape=jax.ShapeDtypeStruct((B, N, D1), jnp.float32),
        compiler_params=pltpu.CompilerParams(
            dimension_semantics=("parallel", "parallel"),
            vmem_limit_bytes=64 * 1024 * 1024,
        ),
    )(node_info, ea_flat, adj, wea, wsend, wrn, be, wna, bn)


# -----------------------------------------------------------------------------
# Pure-JAX reference (mirrors the PyTorch forward exactly)
# -----------------------------------------------------------------------------
def gil4_reference(params, node_code, node_attr, edge_attr, adj):
    B, N, _ = node_code.shape
    node_info = jnp.concatenate([node_code, node_attr], axis=2)
    Dni = node_info.shape[-1]
    receiver = jnp.broadcast_to(node_info[:, :, None, :], (B, N, N, Dni))
    sender = jnp.broadcast_to(node_info[:, None, :, :], (B, N, N, Dni))
    edge_input = jnp.concatenate([edge_attr, receiver, sender], axis=3)
    e = edge_input.reshape(B * N * N, -1) @ params["we"] + params["be"]
    edge_code = jax.nn.leaky_relu(e.reshape(B, N, N, -1), negative_slope=0.01)
    edge_agg = (edge_code * adj[:, :, :, None]).sum(2)
    node_input = jnp.concatenate([node_info, edge_agg], axis=2)
    new = node_input.reshape(B * N, -1) @ params["wn"] + params["bn"]
    return new.reshape(B, N, -1)


# -----------------------------------------------------------------------------
# Deterministic parameter construction (matches nn.Linear default init)
# -----------------------------------------------------------------------------
def init_gil4_params(key, n_node_attr, n_node_code, n_edge_attr, n_edge_code):
    Dni = n_node_code + n_node_attr
    e_in = n_edge_attr + 2 * Dni
    n_in = Dni + n_edge_code

    def _u(k, shape, fan_in):
        b = 1.0 / math.sqrt(fan_in)
        return jax.random.uniform(k, shape, jnp.float32, -b, b)

    k = jax.random.split(key, 4)
    return dict(
        we=_u(k[0], (e_in, n_edge_code), e_in),
        be=_u(k[1], (1, n_edge_code), e_in),
        wn=_u(k[2], (n_in, n_node_code), n_in),
        bn=_u(k[3], (1, n_node_code), n_in),
    )


# -----------------------------------------------------------------------------
# Main
# -----------------------------------------------------------------------------
if __name__ == "__main__":
    B, N = 2, 8
    N_NODE_ATTR = 16     # D2
    N_NODE_CODE = 32     # D1
    N_EDGE_ATTR = 8      # D3 = E
    N_EDGE_CODE = 32     # Ec

    root = jax.random.PRNGKey(0)
    kp, k1, k2, k3, k4 = jax.random.split(root, 5)

    params = init_gil4_params(kp, N_NODE_ATTR, N_NODE_CODE,
                              N_EDGE_ATTR, N_EDGE_CODE)

    node_code = jax.random.normal(k1, (B, N, N_NODE_CODE), jnp.float32)
    node_attr = jax.random.normal(k2, (B, N, N_NODE_ATTR), jnp.float32)
    edge_attr = jax.random.normal(k3, (B, N, N, N_EDGE_ATTR), jnp.float32)
    adj = jax.random.bernoulli(k4, 0.5, (B, N, N)).astype(jnp.float32)

    fwd = jax.jit(graph_interaction_layer_4input)
    out = jax.block_until_ready(fwd(params, node_code, node_attr, edge_attr, adj))

    ref = gil4_reference(params, node_code, node_attr, edge_attr, adj)

    assert out.shape == (B, N, N_NODE_CODE)
    assert bool(jnp.all(jnp.isfinite(out)))
    max_err = float(jnp.max(jnp.abs(out - ref)))
    # all-f32 path with f32 accumulation: tight tolerance
    assert max_err < 1e-3, f"kernel/reference mismatch: max abs err {max_err}"
    print("KERNEL_OK")
</pallas_src>

<mosaic_0001>
module attributes {stable_mosaic.version = 11 : i64} {
  func.func @_gil4_kernel(%arg0: i32, %arg1: i32, %arg2: memref<1x8x48xf32, #tpu.memory_space<vmem>>, %arg3: memref<1x64x8xf32, #tpu.memory_space<vmem>>, %arg4: memref<1x8x8xf32, #tpu.memory_space<vmem>>, %arg5: memref<8x32xf32, #tpu.memory_space<vmem>>, %arg6: memref<48x32xf32, #tpu.memory_space<vmem>>, %arg7: memref<48x64xf32, #tpu.memory_space<vmem>>, %arg8: memref<1x32xf32, #tpu.memory_space<vmem>>, %arg9: memref<32x32xf32, #tpu.memory_space<vmem>>, %arg10: memref<1x32xf32, #tpu.memory_space<vmem>>, %arg11: memref<1x8x32xf32, #tpu.memory_space<vmem>>) attributes {dimension_semantics = [#tpu.dimension_semantics<parallel>, #tpu.dimension_semantics<parallel>], iteration_bounds = array<i64: 2, 1>, scalar_prefetch = 0 : i64, scratch_operands = 0 : i64, tpu.core_type = #tpu.core_type<tc>, window_params = [{transform_indices = @transform_0, window_bounds = array<i64: 1, 8, 48>}, {transform_indices = @transform_1, window_bounds = array<i64: 1, 64, 8>}, {transform_indices = @transform_2, window_bounds = array<i64: 1, 8, 8>}, {pipeline_mode = #tpu.pipeline_mode<synchronous>, transform_indices = @transform_3, window_bounds = array<i64: 8, 32>}, {pipeline_mode = #tpu.pipeline_mode<synchronous>, transform_indices = @transform_4, window_bounds = array<i64: 48, 32>}, {pipeline_mode = #tpu.pipeline_mode<synchronous>, transform_indices = @transform_5, window_bounds = array<i64: 48, 64>}, {pipeline_mode = #tpu.pipeline_mode<synchronous>, transform_indices = @transform_6, window_bounds = array<i64: 1, 32>}, {pipeline_mode = #tpu.pipeline_mode<synchronous>, transform_indices = @transform_7, window_bounds = array<i64: 32, 32>}, {pipeline_mode = #tpu.pipeline_mode<synchronous>, transform_indices = @transform_8, window_bounds = array<i64: 1, 32>}, {transform_indices = @transform_9, window_bounds = array<i64: 1, 8, 32>}]} {
    %c8_i32 = arith.constant 8 : i32
    %0 = arith.muli %arg1, %c8_i32 : i32
    %1 = tpu.assume_multiple %0, 8 : i32
    %c0 = arith.constant 0 : index
    %c0_0 = arith.constant 0 : index
    %c0_1 = arith.constant 0 : index
    %2 = vector.load %arg2[%c0, %c0_0, %c0_1] : memref<1x8x48xf32, #tpu.memory_space<vmem>>, vector<1x8x48xf32>
    %3 = vector.shape_cast %2 : vector<1x8x48xf32> to vector<8x48xf32>
    %c0_2 = arith.constant 0 : index
    %4 = arith.index_cast %1 : i32 to index
    %c0_3 = arith.constant 0 : index
    %5 = vector.load %arg2[%c0_2, %4, %c0_3] : memref<1x8x48xf32, #tpu.memory_space<vmem>>, vector<1x8x48xf32>
    %6 = vector.shape_cast %5 : vector<1x8x48xf32> to vector<8x48xf32>
    %c0_4 = arith.constant 0 : index
    %c0_5 = arith.constant 0 : index
    %7 = vector.load %arg6[%c0_4, %c0_5] : memref<48x32xf32, #tpu.memory_space<vmem>>, vector<48x32xf32>
    %cst = arith.constant dense<0.000000e+00> : vector<8x32xf32>
    %8 = tpu.matmul %3, %7, %cst {dimension_numbers = #tpu.dot_dimension_numbers<[1], [0], [0], [1], [0, 0, 1, 1], [], []>} : vector<8x48xf32>, vector<48x32xf32>, vector<8x32xf32> -> vector<8x32xf32>
    %c0_6 = arith.constant 0 : index
    %c0_7 = arith.constant 0 : index
    %9 = vector.load %arg7[%c0_6, %c0_7] : memref<48x64xf32, #tpu.memory_space<vmem>>, vector<48x64xf32>
    %cst_8 = arith.constant dense<0.000000e+00> : vector<8x64xf32>
    %10 = tpu.matmul %6, %9, %cst_8 {dimension_numbers = #tpu.dot_dimension_numbers<[1], [0], [0], [1], [0, 0, 1, 1], [], []>} : vector<8x48xf32>, vector<48x64xf32>, vector<8x64xf32> -> vector<8x64xf32>
    %11 = vector.extract_strided_slice %10 {offsets = [0, 0], sizes = [8, 32], strides = [1, 1]} : vector<8x64xf32> to vector<8x32xf32>
    %12 = vector.extract_strided_slice %10 {offsets = [0, 32], sizes = [8, 32], strides = [1, 1]} : vector<8x64xf32> to vector<8x32xf32>
    %c0_9 = arith.constant 0 : index
    %c0_10 = arith.constant 0 : index
    %c0_11 = arith.constant 0 : index
    %13 = vector.load %arg3[%c0_9, %c0_10, %c0_11] : memref<1x64x8xf32, #tpu.memory_space<vmem>>, vector<1x64x8xf32>
    %14 = vector.shape_cast %13 : vector<1x64x8xf32> to vector<64x8xf32>
    %c0_12 = arith.constant 0 : index
    %c0_13 = arith.constant 0 : index
    %15 = vector.load %arg5[%c0_12, %c0_13] : memref<8x32xf32, #tpu.memory_space<vmem>>, vector<8x32xf32>
    %cst_14 = arith.constant dense<0.000000e+00> : vector<64x32xf32>
    %16 = tpu.matmul %14, %15, %cst_14 {dimension_numbers = #tpu.dot_dimension_numbers<[1], [0], [0], [1], [0, 0, 1, 1], [], []>} : vector<64x8xf32>, vector<8x32xf32>, vector<64x32xf32> -> vector<64x32xf32>
    %17 = vector.shape_cast %16 : vector<64x32xf32> to vector<8x8x32xf32>
    %18 = vector.shape_cast %11 : vector<8x32xf32> to vector<8x1x32xf32>
    %19 = vector.broadcast %18 : vector<8x1x32xf32> to vector<8x8x32xf32>
    %20 = arith.addf %17, %19 : vector<8x8x32xf32>
    %21 = vector.shape_cast %8 : vector<8x32xf32> to vector<1x8x32xf32>
    %22 = vector.broadcast %21 : vector<1x8x32xf32> to vector<8x8x32xf32>
    %23 = arith.addf %20, %22 : vector<8x8x32xf32>
    %c0_15 = arith.constant 0 : index
    %c0_16 = arith.constant 0 : index
    %24 = vector.load %arg8[%c0_15, %c0_16] : memref<1x32xf32, #tpu.memory_space<vmem>>, vector<1x32xf32>
    %25 = vector.shape_cast %24 : vector<1x32xf32> to vector<32xf32>
    %26 = vector.shape_cast %25 : vector<32xf32> to vector<1x1x32xf32>
    %27 = vector.broadcast %26 : vector<1x1x32xf32> to vector<8x8x32xf32>
    %28 = arith.addf %23, %27 : vector<8x8x32xf32>
    %cst_17 = arith.constant 0.000000e+00 : f32
    %29 = vector.broadcast %cst_17 : f32 to vector<8x8x32xf32>
    %30 = arith.cmpf ogt, %28, %29 : vector<8x8x32xf32>
    %cst_18 = arith.constant 0.00999999977 : f32
    %31 = vector.broadcast %cst_18 : f32 to vector<8x8x32xf32>
    %32 = arith.mulf %31, %28 : vector<8x8x32xf32>
    %33 = arith.select %30, %28, %32 : vector<8x8x32xi1>, vector<8x8x32xf32>
    %c0_19 = arith.constant 0 : index
    %c0_20 = arith.constant 0 : index
    %c0_21 = arith.constant 0 : index
    %34 = vector.load %arg4[%c0_19, %c0_20, %c0_21] : memref<1x8x8xf32, #tpu.memory_space<vmem>>, vector<1x8x8xf32>
    %35 = vector.shape_cast %34 : vector<1x8x8xf32> to vector<8x8xf32>
    %36 = vector.shape_cast %35 : vector<8x8xf32> to vector<8x8x1xf32>
    %37 = vector.broadcast %36 : vector<8x8x1xf32> to vector<8x8x32xf32>
    %38 = arith.mulf %33, %37 : vector<8x8x32xf32>
    %cst_22 = arith.constant dense<0.000000e+00> : vector<8x32xf32>
    %39 = vector.multi_reduction <add>, %38, %cst_22 [1] : vector<8x8x32xf32> to vector<8x32xf32>
    %c0_23 = arith.constant 0 : index
    %c0_24 = arith.constant 0 : index
    %40 = vector.load %arg9[%c0_23, %c0_24] : memref<32x32xf32, #tpu.memory_space<vmem>>, vector<32x32xf32>
    %cst_25 = arith.constant dense<0.000000e+00> : vector<8x32xf32>
    %41 = tpu.matmul %39, %40, %cst_25 {dimension_numbers = #tpu.dot_dimension_numbers<[1], [0], [0], [1], [0, 0, 1, 1], [], []>} : vector<8x32xf32>, vector<32x32xf32>, vector<8x32xf32> -> vector<8x32xf32>
    %42 = arith.addf %12, %41 : vector<8x32xf32>
    %c0_26 = arith.constant 0 : index
    %c0_27 = arith.constant 0 : index
    %43 = vector.load %arg10[%c0_26, %c0_27] : memref<1x32xf32, #tpu.memory_space<vmem>>, vector<1x32xf32>
    %44 = vector.shape_cast %43 : vector<1x32xf32> to vector<32xf32>
    %45 = vector.shape_cast %44 : vector<32xf32> to vector<1x32xf32>
    %46 = vector.broadcast %45 : vector<1x32xf32> to vector<8x32xf32>
    %47 = arith.addf %42, %46 : vector<8x32xf32>
    %c0_28 = arith.constant 0 : index
    %c0_29 = arith.constant 0 : index
    %c0_30 = arith.constant 0 : index
    %48 = vector.load %arg11[%c0_28, %c0_29, %c0_30] : memref<1x8x32xf32, #tpu.memory_space<vmem>>, vector<1x8x32xf32>
    %49 = vector.shape_cast %48 : vector<1x8x32xf32> to vector<8x32xf32>
    %50 = vector.shape_cast %47 : vector<8x32xf32> to vector<1x8x32xf32>
    tpu.vector_store %arg11[%c0_28, %c0_29, %c0_30], %50 {strides = array<i32>} : memref<1x8x32xf32, #tpu.memory_space<vmem>>, vector<1x8x32xf32>,
    return
  }
  func.func @transform_0(%arg0: i32, %arg1: i32) -> (i32, i32, i32) {
    %c0_i32 = arith.constant 0 : i32
    %c0_i32_0 = arith.constant 0 : i32
    %c0_i32_1 = arith.constant 0 : i32
    return %arg0, %c0_i32, %c0_i32_0 : i32, i32, i32
  }
  func.func @transform_1(%arg0: i32, %arg1: i32) -> (i32, i32, i32) {
    %c0_i32 = arith.constant 0 : i32
    %c0_i32_0 = arith.constant 0 : i32
    return %arg0, %arg1, %c0_i32 : i32, i32, i32
  }
  func.func @transform_2(%arg0: i32, %arg1: i32) -> (i32, i32, i32) {
    %c0_i32 = arith.constant 0 : i32
    %c0_i32_0 = arith.constant 0 : i32
    return %arg0, %arg1, %c0_i32 : i32, i32, i32
  }
  func.func @transform_3(%arg0: i32, %arg1: i32) -> (i32, i32) {
    %c0_i32 = arith.constant 0 : i32
    %c0_i32_0 = arith.constant 0 : i32
    %c0_i32_1 = arith.constant 0 : i32
    return %c0_i32, %c0_i32_0 : i32, i32
  }
  func.func @transform_4(%arg0: i32, %arg1: i32) -> (i32, i32) {
    %c0_i32 = arith.constant 0 : i32
    %c0_i32_0 = arith.constant 0 : i32
    %c0_i32_1 = arith.constant 0 : i32
    return %c0_i32, %c0_i32_0 : i32, i32
  }
  func.func @transform_5(%arg0: i32, %arg1: i32) -> (i32, i32) {
    %c0_i32 = arith.constant 0 : i32
    %c0_i32_0 = arith.constant 0 : i32
    %c0_i32_1 = arith.constant 0 : i32
    return %c0_i32, %c0_i32_0 : i32, i32
  }
  func.func @transform_6(%arg0: i32, %arg1: i32) -> (i32, i32) {
    %c0_i32 = arith.constant 0 : i32
    %c0_i32_0 = arith.constant 0 : i32
    %c0_i32_1 = arith.constant 0 : i32
    return %c0_i32, %c0_i32_0 : i32, i32
  }
  func.func @transform_7(%arg0: i32, %arg1: i32) -> (i32, i32) {
    %c0_i32 = arith.constant 0 : i32
    %c0_i32_0 = arith.constant 0 : i32
    %c0_i32_1 = arith.constant 0 : i32
    return %c0_i32, %c0_i32_0 : i32, i32
  }
  func.func @transform_8(%arg0: i32, %arg1: i32) -> (i32, i32) {
    %c0_i32 = arith.constant 0 : i32
    %c0_i32_0 = arith.constant 0 : i32
    %c0_i32_1 = arith.constant 0 : i32
    return %c0_i32, %c0_i32_0 : i32, i32
  }
  func.func @transform_9(%arg0: i32, %arg1: i32) -> (i32, i32, i32) {
    %c0_i32 = arith.constant 0 : i32
    %c0_i32_0 = arith.constant 0 : i32
    return %arg0, %arg1, %c0_i32 : i32, i32, i32
  }
}

</mosaic_0001>

<llo_original>
// kernel: graph_interaction_layer_4input.1
$region0: #{graph_interaction_layer_4input.1}
  #allocation0 [shape = 'u32[]', space=smem, size = 0x4, offset = 0x4, fixed_abs, tag = 'smem constant byte address 0x4 - core index']
  #allocation1 [shape = 'u32[144,128]{1,0:T(1,128)}', space=vmem, size = 0x12000, scoped, tag = 'internal scratch']
  %s0 = inlined_call_operand.vmem [shape: f32[2,8,48], index: 0, kind: input, shape index: {}]
  %s1 = inlined_call_operand.vmem [shape: f32[2,64,8], index: 1, kind: input, shape index: {}]
  %s2 = inlined_call_operand.vmem [shape: f32[2,8,8], index: 2, kind: input, shape index: {}]
  %s3 = inlined_call_operand.vmem [shape: f32[8,32], index: 3, kind: input, shape index: {}]
  %s4 = inlined_call_operand.vmem [shape: f32[48,32], index: 4, kind: input, shape index: {}]
  %s5 = inlined_call_operand.vmem [shape: f32[48,64], index: 5, kind: input, shape index: {}]
  %s6 = inlined_call_operand.vmem [shape: f32[1,32], index: 6, kind: input, shape index: {}]
  %s7 = inlined_call_operand.vmem [shape: f32[32,32], index: 7, kind: input, shape index: {}]
  %s8 = inlined_call_operand.vmem [shape: f32[1,32], index: 8, kind: input, shape index: {}]
  %s9 = inlined_call_operand.hbm [shape: f32[2,8,32], index: 9, kind: output, shape index: {}]
  %s10 = sld [smem:[#allocation0]]
  $region69: #{graph_interaction_layer_4input.1} parent=0
    _
  %s12 = ssub.s32 1, %s10
  %s13 = scalar_select 0, %s12, %s10
  $region1: #{graph_interaction_layer_4input.1} parent=0
    #allocation2 [shape = 'u8[8192]{0}', space=vmem, size = 0x2000, scoped, tag = 'output window, operand 0']
    #allocation3 [shape = 's32[2]{0}', space=sflag, size = 0x8, scoped, tag = 'scoped memory for graph_interaction_layer_4input.1']
    %14 = vsyncpa [#allocation3], 0
    %s15 = scalar_lea.sflag [#allocation3], 1
    %16 = vsyncpa %s15, 0
    loop: start=0, step=1, limit=4
    $region2: #{graph_interaction_layer_4input.1} parent=1 // loop_pre_header
      _
    $region3: #{graph_interaction_layer_4input.1} parent=1 // loop_header
      %s18 = sphi 0, %s22
      %p19 = scmp.ge.s32.totalorder %s18, 4
      %s25 = sphi 0, %s37
      %s26 = sphi 0, %s33
      %s27 = sphi 0, %s25
      %s28 = sphi 0, %s26
      %s29 = sphi 0, %s27
      %s30 = sphi 0, %s28
      %s40 = sphi 0, %s42
      %s43 = sphi 0, %s40
      %s44 = sphi 0, %s43
      %s60 = sphi 0, %s44
      %s68 = sphi 0, %s70
      %s71 = sphi 0, %s68
      %s72 = sphi 0, %s71
      %s88 = sphi 0, %s72
      %s96 = sphi 0, %s98
      %s99 = sphi 0, %s96
      %s100 = sphi 0, %s99
      %s116 = sphi 0, %s100
      %s120 = sphi 0, %s120
      %s122 = sphi 0, %s120
      %s123 = sphi 0, %s122
      %s137 = sphi 0, %s123
      %s141 = sphi 0, %s141
      %s143 = sphi 0, %s141
      %s144 = sphi 0, %s143
      %s158 = sphi 0, %s144
      %s162 = sphi 0, %s162
      %s164 = sphi 0, %s162
      %s165 = sphi 0, %s164
      %s179 = sphi 0, %s165
      %s183 = sphi 0, %s183
      %s185 = sphi 0, %s183
      %s186 = sphi 0, %s185
      %s200 = sphi 0, %s186
      %s204 = sphi 0, %s204
      %s206 = sphi 0, %s204
      %s207 = sphi 0, %s206
      %s221 = sphi 0, %s207
      %s225 = sphi 0, %s225
      %s227 = sphi 0, %s225
      %s228 = sphi 0, %s227
      %s242 = sphi 0, %s228
      %s250 = sphi 0, %s252
      %s253 = sphi 0, %s250
      %s254 = sphi 0, %s253
      %s270 = sphi 0, %s254
    $region4: #{graph_interaction_layer_4input.1} parent=1 // loop_header_branch
      %21 = sbr.rel (%p19) target = $region8
    $region5: #{graph_interaction_layer_4input.1} parent=1 // loop_body
      %s23 = ssub.s32 %s18, 1
      %s24 = ssub.s32 %s18, 2
      %s31 = sadd.s32 1, %s26
      %p32 = scmp.ge.s32.totalorder %s31, 1
      %s33 = scalar_select %p32, 0, %s31
      %s34 = sadd.s32 1, %s25
      %s35 = scalar_select %p32, %s34, %s25
      %p36 = scmp.ge.s32.totalorder %s35, 2
      %s37 = scalar_select %p36, 0, %s35
      %s38 = ssub.s32 %s25, %s37
      %p39 = scmp.eq.s32.totalorder %s38, 0
      %s41 = sadd.s32 %s40, 1
      %s42 = scalar_select %p39, %s40, %s41
      %p45 = pneg %p39
      %p46 = scmp.eq.s32.totalorder %s18, 1
      %p47 = por %p45, %p46
      %p48 = scmp.ne.s32.totalorder %s40, %s43
      %p49 = scmp.eq.s32.totalorder %s18, 0
      %p50 = por %p48, %p49
      %p51 = scmp.ne.s32.totalorder %s40, %s43
      %p52 = scmp.eq.s32.totalorder %s23, 1
      %p53 = por %p51, %p52
      %p54 = scmp.ne.s32.totalorder %s43, %s44
      %p55 = scmp.eq.s32.totalorder %s23, 0
      %p56 = por %p54, %p55
      %p57 = scmp.ne.s32.totalorder %s43, %s44
      %p58 = scmp.eq.s32.totalorder %s24, 1
      %p59 = por %p57, %p58
      %p61 = scmp.ne.s32.totalorder %s44, %s60
      %p62 = scmp.eq.s32.totalorder %s24, 0
      %p63 = por %p61, %p62
      %s64 = ssub.s32 %s25, %s37
      %s65 = ssub.s32 %s26, %s33
      %s66 = sor.u32 %s64, %s65
      %p67 = scmp.eq.s32.totalorder %s66, 0
      %s69 = sadd.s32 %s68, 1
      %s70 = scalar_select %p67, %s68, %s69
      %p73 = pneg %p67
      %p74 = scmp.eq.s32.totalorder %s18, 1
      %p75 = por %p73, %p74
      %p76 = scmp.ne.s32.totalorder %s68, %s71
      %p77 = scmp.eq.s32.totalorder %s18, 0
      %p78 = por %p76, %p77
      %p79 = scmp.ne.s32.totalorder %s68, %s71
      %p80 = scmp.eq.s32.totalorder %s23, 1
      %p81 = por %p79, %p80
      %p82 = scmp.ne.s32.totalorder %s71, %s72
      %p83 = scmp.eq.s32.totalorder %s23, 0
      %p84 = por %p82, %p83
      %p85 = scmp.ne.s32.totalorder %s71, %s72
      %p86 = scmp.eq.s32.totalorder %s24, 1
      %p87 = por %p85, %p86
      %p89 = scmp.ne.s32.totalorder %s72, %s88
      %p90 = scmp.eq.s32.totalorder %s24, 0
      %p91 = por %p89, %p90
      %s92 = ssub.s32 %s25, %s37
      %s93 = ssub.s32 %s26, %s33
      %s94 = sor.u32 %s92, %s93
      %p95 = scmp.eq.s32.totalorder %s94, 0
      %s97 = sadd.s32 %s96, 1
      %s98 = scalar_select %p95, %s96, %s97
      %p101 = pneg %p95
      %p102 = scmp.eq.s32.totalorder %s18, 1
      %p103 = por %p101, %p102
      %p104 = scmp.ne.s32.totalorder %s96, %s99
      %p105 = scmp.eq.s32.totalorder %s18, 0
      %p106 = por %p104, %p105
      %p107 = scmp.ne.s32.totalorder %s96, %s99
      %p108 = scmp.eq.s32.totalorder %s23, 1
      %p109 = por %p107, %p108
      %p110 = scmp.ne.s32.totalorder %s99, %s100
      %p111 = scmp.eq.s32.totalorder %s23, 0
      %p112 = por %p110, %p111
      %p113 = scmp.ne.s32.totalorder %s99, %s100
      %p114 = scmp.eq.s32.totalorder %s24, 1
      %p115 = por %p113, %p114
      %p117 = scmp.ne.s32.totalorder %s100, %s116
      %p118 = scmp.eq.s32.totalorder %s24, 0
      %p119 = por %p117, %p118
      %s121 = sadd.s32 %s120, 1
      %p124 = scmp.eq.s32.totalorder %s18, 1
      %p125 = scmp.ne.s32.totalorder %s120, %s122
      %p126 = scmp.eq.s32.totalorder %s18, 0
      %p127 = por %p125, %p126
      %p128 = scmp.ne.s32.totalorder %s120, %s122
      %p129 = scmp.eq.s32.totalorder %s23, 1
      %p130 = por %p128, %p129
      %p131 = scmp.ne.s32.totalorder %s122, %s123
      %p132 = scmp.eq.s32.totalorder %s23, 0
      %p133 = por %p131, %p132
      %p134 = scmp.ne.s32.totalorder %s122, %s123
      %p135 = scmp.eq.s32.totalorder %s24, 1
      %p136 = por %p134, %p135
      %p138 = scmp.ne.s32.totalorder %s123, %s137
      %p139 = scmp.eq.s32.totalorder %s24, 0
      %p140 = por %p138, %p139
      %s142 = sadd.s32 %s141, 1
      %p145 = scmp.eq.s32.totalorder %s18, 1
      %p146 = scmp.ne.s32.totalorder %s141, %s143
      %p147 = scmp.eq.s32.totalorder %s18, 0
      %p148 = por %p146, %p147
      %p149 = scmp.ne.s32.totalorder %s141, %s143
      %p150 = scmp.eq.s32.totalorder %s23, 1
      %p151 = por %p149, %p150
      %p152 = scmp.ne.s32.totalorder %s143, %s144
      %p153 = scmp.eq.s32.totalorder %s23, 0
      %p154 = por %p152, %p153
      %p155 = scmp.ne.s32.totalorder %s143, %s144
      %p156 = scmp.eq.s32.totalorder %s24, 1
      %p157 = por %p155, %p156
      %p159 = scmp.ne.s32.totalorder %s144, %s158
      %p160 = scmp.eq.s32.totalorder %s24, 0
      %p161 = por %p159, %p160
      %s163 = sadd.s32 %s162, 1
      %p166 = scmp.eq.s32.totalorder %s18, 1
      %p167 = scmp.ne.s32.totalorder %s162, %s164
      %p168 = scmp.eq.s32.totalorder %s18, 0
      %p169 = por %p167, %p168
      %p170 = scmp.ne.s32.totalorder %s162, %s164
      %p171 = scmp.eq.s32.totalorder %s23, 1
      %p172 = por %p170, %p171
      %p173 = scmp.ne.s32.totalorder %s164, %s165
      %p174 = scmp.eq.s32.totalorder %s23, 0
      %p175 = por %p173, %p174
      %p176 = scmp.ne.s32.totalorder %s164, %s165
      %p177 = scmp.eq.s32.totalorder %s24, 1
      %p178 = por %p176, %p177
      %p180 = scmp.ne.s32.totalorder %s165, %s179
      %p181 = scmp.eq.s32.totalorder %s24, 0
      %p182 = por %p180, %p181
      %s184 = sadd.s32 %s183, 1
      %p187 = scmp.eq.s32.totalorder %s18, 1
      %p188 = scmp.ne.s32.totalorder %s183, %s185
      %p189 = scmp.eq.s32.totalorder %s18, 0
      %p190 = por %p188, %p189
      %p191 = scmp.ne.s32.totalorder %s183, %s185
      %p192 = scmp.eq.s32.totalorder %s23, 1
      %p193 = por %p191, %p192
      %p194 = scmp.ne.s32.totalorder %s185, %s186
      %p195 = scmp.eq.s32.totalorder %s23, 0
      %p196 = por %p194, %p195
      %p197 = scmp.ne.s32.totalorder %s185, %s186
      %p198 = scmp.eq.s32.totalorder %s24, 1
      %p199 = por %p197, %p198
      %p201 = scmp.ne.s32.totalorder %s186, %s200
      %p202 = scmp.eq.s32.totalorder %s24, 0
      %p203 = por %p201, %p202
      %s205 = sadd.s32 %s204, 1
      %p208 = scmp.eq.s32.totalorder %s18, 1
      %p209 = scmp.ne.s32.totalorder %s204, %s206
      %p210 = scmp.eq.s32.totalorder %s18, 0
      %p211 = por %p209, %p210
      %p212 = scmp.ne.s32.totalorder %s204, %s206
      %p213 = scmp.eq.s32.totalorder %s23, 1
      %p214 = por %p212, %p213
      %p215 = scmp.ne.s32.totalorder %s206, %s207
      %p216 = scmp.eq.s32.totalorder %s23, 0
      %p217 = por %p215, %p216
      %p218 = scmp.ne.s32.totalorder %s206, %s207
      %p219 = scmp.eq.s32.totalorder %s24, 1
      %p220 = por %p218, %p219
      %p222 = scmp.ne.s32.totalorder %s207, %s221
      %p223 = scmp.eq.s32.totalorder %s24, 0
      %p224 = por %p222, %p223
      %s226 = sadd.s32 %s225, 1
      %p229 = scmp.eq.s32.totalorder %s18, 1
      %p230 = scmp.ne.s32.totalorder %s225, %s227
      %p231 = scmp.eq.s32.totalorder %s18, 0
      %p232 = por %p230, %p231
      %p233 = scmp.ne.s32.totalorder %s225, %s227
      %p234 = scmp.eq.s32.totalorder %s23, 1
      %p235 = por %p233, %p234
      %p236 = scmp.ne.s32.totalorder %s227, %s228
      %p237 = scmp.eq.s32.totalorder %s23, 0
      %p238 = por %p236, %p237
      %p239 = scmp.ne.s32.totalorder %s227, %s228
      %p240 = scmp.eq.s32.totalorder %s24, 1
      %p241 = por %p239, %p240
      %p243 = scmp.ne.s32.totalorder %s228, %s242
      %p244 = scmp.eq.s32.totalorder %s24, 0
      %p245 = por %p243, %p244
      %s246 = ssub.s32 %s25, %s37
      %s247 = ssub.s32 %s26, %s33
      %s248 = sor.u32 %s246, %s247
      %p249 = scmp.eq.s32.totalorder %s248, 0
      %s251 = sadd.s32 %s250, 1
      %s252 = scalar_select %p249, %s250, %s251
      %p255 = pneg %p249
      %p256 = scmp.eq.s32.totalorder %s18, 1
      %p257 = por %p255, %p256
      %p258 = scmp.ne.s32.totalorder %s250, %s253
      %p259 = scmp.eq.s32.totalorder %s18, 0
      %p260 = por %p258, %p259
      %p261 = scmp.ne.s32.totalorder %s250, %s253
      %p262 = scmp.eq.s32.totalorder %s23, 1
      %p263 = por %p261, %p262
      %p264 = scmp.ne.s32.totalorder %s253, %s254
      %p265 = scmp.eq.s32.totalorder %s23, 0
      %p266 = por %p264, %p265
      %p267 = scmp.ne.s32.totalorder %s253, %s254
      %p268 = scmp.eq.s32.totalorder %s24, 1
      %p269 = por %p267, %p268
      %p271 = scmp.ne.s32.totalorder %s254, %s270
      %p272 = scmp.eq.s32.totalorder %s24, 0
      %p273 = por %p271, %p272
      %p274 = scmp.le.s32.totalorder 1, %s18
      %p275 = scmp.lt.s32.totalorder %s18, 3
      %p276 = pnand %p274, %p275
      %p277 = pneg %p276
      // Predicated region
      $region9: #{graph_interaction_layer_4input.1} parent=5 // pred_check
        _
      $region10: #{graph_interaction_layer_4input.1} parent=5 // pred_check_branch
        %279 = sbr.rel (%p276) target = $region12
      $region11: #{graph_interaction_layer_4input.1} parent=5 // pred_region
        %s280 = ssub.s32 %s18, 1
        // Predicated region
        $region13: #{graph_interaction_layer_4input.1} parent=11 // pred_check
          %p281 = pneg %p133
        $region14: #{graph_interaction_layer_4input.1} parent=11 // pred_check_branch
          %283 = sbr.rel (%p281) target = $region16
        $region15: #{graph_interaction_layer_4input.1} parent=11 // pred_region
          _
        $region16: #{graph_interaction_layer_4input.1} parent=11 // pred_fallthru
          _
        // Predicated region
        $region17: #{graph_interaction_layer_4input.1} parent=11 // pred_check
          %p284 = pneg %p154
        $region18: #{graph_interaction_layer_4input.1} parent=11 // pred_check_branch
          %286 = sbr.rel (%p284) target = $region20
        $region19: #{graph_interaction_layer_4input.1} parent=11 // pred_region
          _
        $region20: #{graph_interaction_layer_4input.1} parent=11 // pred_fallthru
          _
        // Predicated region
        $region21: #{graph_interaction_layer_4input.1} parent=11 // pred_check
          %p287 = pneg %p175
        $region22: #{graph_interaction_layer_4input.1} parent=11 // pred_check_branch
          %289 = sbr.rel (%p287) target = $region24
        $region23: #{graph_interaction_layer_4input.1} parent=11 // pred_region
          _
        $region24: #{graph_interaction_layer_4input.1} parent=11 // pred_fallthru
          _
        // Predicated region
        $region25: #{graph_interaction_layer_4input.1} parent=11 // pred_check
          %p290 = pneg %p196
        $region26: #{graph_interaction_layer_4input.1} parent=11 // pred_check_branch
          %292 = sbr.rel (%p290) target = $region28
        $region27: #{graph_interaction_layer_4input.1} parent=11 // pred_region
          _
        $region28: #{graph_interaction_layer_4input.1} parent=11 // pred_fallthru
          _
        // Predicated region
        $region29: #{graph_interaction_layer_4input.1} parent=11 // pred_check
          %p293 = pneg %p217
        $region30: #{graph_interaction_layer_4input.1} parent=11 // pred_check_branch
          %295 = sbr.rel (%p293) target = $region32
        $region31: #{graph_interaction_layer_4input.1} parent=11 // pred_region
          _
        $region32: #{graph_interaction_layer_4input.1} parent=11 // pred_fallthru
          _
        // Predicated region
        $region33: #{graph_interaction_layer_4input.1} parent=11 // pred_check
          %p296 = pneg %p238
        $region34: #{graph_interaction_layer_4input.1} parent=11 // pred_check_branch
          %298 = sbr.rel (%p296) target = $region36
        $region35: #{graph_interaction_layer_4input.1} parent=11 // pred_region
          _
        $region36: #{graph_interaction_layer_4input.1} parent=11 // pred_fallthru
          _
      $region12: #{graph_interaction_layer_4input.1} parent=5 // pred_fallthru
        _
      %p299 = scmp.lt.s32.totalorder %s18, 2
      // Predicated region
      $region37: #{graph_interaction_layer_4input.1} parent=5 // pred_check
        %p300 = pneg %p299
      $region38: #{graph_interaction_layer_4input.1} parent=5 // pred_check_branch
        %302 = sbr.rel (%p300) target = $region40
      $region39: #{graph_interaction_layer_4input.1} parent=5 // pred_region
        // Predicated region
        $region41: #{graph_interaction_layer_4input.1} parent=39 // pred_check
          %p303 = pneg %p50
        $region42: #{graph_interaction_layer_4input.1} parent=39 // pred_check_branch
          %305 = sbr.rel (%p303) target = $region44
        $region43: #{graph_interaction_layer_4input.1} parent=39 // pred_region
          %p306 = scmp.lt.s32.totalorder %s25, 1
          %s307 = scalar_select %p306, %s25, 1
          %s308 = smul.addr %s307, 8
          %s309 = scalar_lea.vmem %s0, %s308
        $region44: #{graph_interaction_layer_4input.1} parent=39 // pred_fallthru
          _
        // Predicated region
        $region45: #{graph_interaction_layer_4input.1} parent=39 // pred_check
          %p310 = pneg %p78
        $region46: #{graph_interaction_layer_4input.1} parent=39 // pred_check_branch
          %312 = sbr.rel (%p310) target = $region48
        $region47: #{graph_interaction_layer_4input.1} parent=39 // pred_region
          %s313 = smul.u32 8, %s26
          %p314 = scmp.lt.s32.totalorder %s25, 1
          %s315 = scalar_select %p314, %s25, 1
          %p316 = scmp.lt.s32.totalorder %s313, 7
          %s317 = scalar_select %p316, %s313, 7
          %s318 = smul.addr %s315, 8
          %s319 = sadd.s32 %s317, %s318
          %s320 = smul.addr %s319, 8
          %s321 = scalar_lea.vmem %s1, %s320
          %s322 = smul.u32 8, %s26
        $region48: #{graph_interaction_layer_4input.1} parent=39 // pred_fallthru
          _
        // Predicated region
        $region49: #{graph_interaction_layer_4input.1} parent=39 // pred_check
          %p323 = pneg %p106
        $region50: #{graph_interaction_layer_4input.1} parent=39 // pred_check_branch
          %325 = sbr.rel (%p323) target = $region52
        $region51: #{graph_interaction_layer_4input.1} parent=39 // pred_region
          %p326 = scmp.lt.s32.totalorder %s25, 1
          %s327 = scalar_select %p326, %s25, 1
          %p328 = scmp.lt.s32.totalorder %s26, 0
          %s329 = scalar_select %p328, %s26, 0
          %s330 = sadd.s32 %s329, %s327
          %s331 = smul.addr %s330, 8
          %s332 = scalar_lea.vmem %s2, %s331
        $region52: #{graph_interaction_layer_4input.1} parent=39 // pred_fallthru
          _
      $region40: #{graph_interaction_layer_4input.1} parent=5 // pred_fallthru
        _
      %p333 = scmp.le.s32.totalorder 1, %s18
      %p334 = scmp.lt.s32.totalorder %s18, 3
      %p335 = pnand %p333, %p334
      %p336 = pneg %p335
      // Predicated region
      $region53: #{graph_interaction_layer_4input.1} parent=5 // pred_check
        _
      $region54: #{graph_interaction_layer_4input.1} parent=5 // pred_check_branch
        %338 = sbr.rel (%p335) target = $region56
      $region55: #{graph_interaction_layer_4input.1} parent=5 // pred_region
        %s339 = ssub.s32 %s18, 1
        %p340 = scmp.lt.s32.totalorder %s27, 1
        %s341 = scalar_select %p340, %s27, 1
        %s342 = smul.addr %s341, 8
        %s343 = scalar_lea.vmem %s0, %s342
        %p344 = pneg %p56
        %p345 = pneg %p53
        %s346 = smul.u32 8, %s28
        %p347 = scmp.lt.s32.totalorder %s27, 1
        %s348 = scalar_select %p347, %s27, 1
        %p349 = scmp.lt.s32.totalorder %s346, 7
        %s350 = scalar_select %p349, %s346, 7
        %s351 = smul.addr %s348, 8
        %s352 = sadd.s32 %s350, %s351
        %s353 = smul.addr %s352, 8
        %s354 = scalar_lea.vmem %s1, %s353
        %p355 = pneg %p84
        %p356 = pneg %p81
        %p357 = scmp.lt.s32.totalorder %s27, 1
        %s358 = scalar_select %p357, %s27, 1
        %p359 = scmp.lt.s32.totalorder %s28, 0
        %s360 = scalar_select %p359, %s28, 0
        %s361 = sadd.s32 %s360, %s358
        %s362 = smul.addr %s361, 8
        %s363 = scalar_lea.vmem %s2, %s362
        %p364 = pneg %p112
        %p365 = pneg %p109
        %p366 = pneg %p133
        %p367 = pneg %p130
        %p368 = pneg %p154
        %p369 = pneg %p151
        %p370 = pneg %p175
        %p371 = pneg %p172
        %p372 = pneg %p196
        %p373 = pneg %p193
        %p374 = pneg %p217
        %p375 = pneg %p214
        %p376 = pneg %p238
        %p377 = pneg %p235
        %p378 = pneg %p266
        %p379 = pneg %p263
        %s380 = sand.u32 %s253, 1
        %s381 = scalar_lea.sflag [#allocation3], %s380
        %s382 = sand.u32 %s253, 1
        %s383 = smul.addr %s382, 8
        %s384 = scalar_lea.vmem [#allocation2], %s383
        %p385 = scmp.lt.s32.totalorder %s27, 1
        %s386 = scalar_select %p385, %s27, 1
        %s387 = smul.addr %s386, 8
        %s388 = scalar_lea.vmem %s0, %s387
        %s389 = smul.u32 8, %s28
        %p390 = scmp.lt.s32.totalorder %s27, 1
        %s391 = scalar_select %p390, %s27, 1
        %p392 = scmp.lt.s32.totalorder %s389, 7
        %s393 = scalar_select %p392, %s389, 7
        %s394 = smul.addr %s391, 8
        %s395 = sadd.s32 %s393, %s394
        %s396 = smul.addr %s395, 8
        %s397 = scalar_lea.vmem %s1, %s396
        %s398 = smul.u32 8, %s28
        %p399 = scmp.lt.s32.totalorder %s27, 1
        %s400 = scalar_select %p399, %s27, 1
        %p401 = scmp.lt.s32.totalorder %s28, 0
        %s402 = scalar_select %p401, %s28, 0
        %s403 = sadd.s32 %s402, %s400
        %s404 = smul.addr %s403, 8
        %s405 = scalar_lea.vmem %s2, %s404
        %s406 = smul.u32 %s28, 8
        %v407 = vld [vmem:[%s388] sm:$0xff]
        %s408 = scalar_lea.vmem %s388, %s406
        %v409 = vld [vmem:[%s408] sm:$0xff]
        %v410 = vld [vmem:[%s4] sm:$0xff]
        %v411 = vld [vmem:[%s4 + $0x8] sm:$0xff]
        %v412 = vld [vmem:[%s4 + $0x10] sm:$0xff]
        %v413 = vld [vmem:[%s4 + $0x18] sm:$0xff]
        %v414 = vld [vmem:[%s4 + $0x20] sm:$0xff]
        %v415 = vld [vmem:[%s4 + $0x28] sm:$0xff]
        %vm416 = vcmask 392192
        %v418 = vsel %vm416, %v407, 0
        %420 = vmatprep.subr.mxu0 0.0
        %421 = vmatpush1.msra.mxu0 0.0
        %422 = vmatprep.subr.mxu0 0.0
        %423 = vmatpush1.msra.mxu0 0.0
        %424 = vmatprep.subr.mxu0 0.0
        %425 = vmatpush1.msra.mxu0 0.0
        %426 = vmatprep.subr.mxu0 0.0
        %427 = vmatpush1.msra.mxu0 0.0
        %428 = vmatprep.subr.mxu0 0.0
        %429 = vmatpush1.msra.mxu0 0.0
        %430 = vmatprep.subr.mxu0 0.0
        %431 = vmatpush1.msra.mxu0 0.0
        %432 = vmatprep.subr.mxu0 0.0
        %433 = vmatpush1.msra.mxu0 0.0
        %434 = vmatprep.subr.mxu0 0.0
        %435 = vmatpush1.msra.mxu0 0.0
        %436 = vmatprep.subr.mxu0 0.0
        %437 = vmatpush1.msra.mxu0 0.0
        %438 = vmatprep.subr.mxu0 0.0
        %439 = vmatpush1.msra.mxu0 0.0
        %440 = vmatprep.subr.mxu0 0.0
        %441 = vmatpush1.msra.mxu0 %v415
        %442 = vmatprep.subr.mxu0 0.0
        %443 = vmatpush1.msra.mxu0 %v414
        %444 = vmatprep.subr.mxu0 0.0
        %445 = vmatpush1.msra.mxu0 %v413
        %446 = vmatprep.subr.mxu0 0.0
        %447 = vmatpush1.msra.mxu0 %v412
        %448 = vmatprep.subr.mxu0 0.0
        %449 = vmatpush1.msra.mxu0 %v411
        %450 = vmatprep.subr.mxu0 0.0
        %451 = vmatpush1.msra.mxu0 %v410
        %452 = vmatprep.subr.mxu0 0.0
        %453 = vmatpush2.msra.mxu0 0.0
        %454 = vmatprep.subr.mxu0 0.0
        %455 = vmatpush2.msra.mxu0 0.0
        %456 = vmatprep.subr.mxu0 0.0
        %457 = vmatpush2.msra.mxu0 0.0
        %458 = vmatprep.subr.mxu0 0.0
        %459 = vmatpush2.msra.mxu0 0.0
        %460 = vmatprep.subr.mxu0 0.0
        %461 = vmatpush2.msra.mxu0 0.0
        %462 = vmatprep.subr.mxu0 0.0
        %463 = vmatpush2.msra.mxu0 0.0
        %464 = vmatprep.subr.mxu0 0.0
        %465 = vmatpush2.msra.mxu0 0.0
        %466 = vmatprep.subr.mxu0 0.0
        %467 = vmatpush2.msra.mxu0 0.0
        %468 = vmatprep.subr.mxu0 0.0
        %469 = vmatpush2.msra.mxu0 0.0
        %470 = vmatprep.subr.mxu0 0.0
        %471 = vmatpush2.msra.mxu0 0.0
        %472 = vmatprep.subr.mxu0 0.0
        %473 = vmatpush2.msra.mxu0 0.0
        %474 = vmatprep.subr.mxu0 0.0
        %475 = vmatpush2.msra.mxu0 0.0
        %476 = vmatprep.subr.mxu0 0.0
        %477 = vmatpush2.msra.mxu0 0.0
        %478 = vmatprep.subr.mxu0 0.0
        %479 = vmatpush2.msra.mxu0 0.0
        %480 = vmatprep.subr.mxu0 0.0
        %481 = vmatpush2.msra.mxu0 0.0
        %482 = vmatprep.subr.mxu0 0.0
        %483 = vmatpush2.msra.mxu0 0.0
        %484 = vmatprep.mubr.f32.mxu0 0.0
        %485 = vmatmul.mubr.f32.gmra.mxu0 %v418
        %v486 = vpop.f32.mrf.mxu0
        %v487 = vadd.f32 0.0, %v486
        %v488 = vpop.f32.mrf.mxu0
        %489 = vdwg.mxu0
        %v490 = vld [vmem:[%s5] sm:$0xff]
        %v491 = vld [vmem:[%s5 + $0x8] sm:$0xff]
        %v492 = vld [vmem:[%s5 + $0x10] sm:$0xff]
        %v493 = vld [vmem:[%s5 + $0x18] sm:$0xff]
        %v494 = vld [vmem:[%s5 + $0x20] sm:$0xff]
        %v495 = vld [vmem:[%s5 + $0x28] sm:$0xff]
        %v497 = vsel %vm416, %v409, 0
        %499 = vmatprep.subr.mxu0 0.0
        %500 = vmatpush1.msra.mxu0 0.0
        %501 = vmatprep.subr.mxu0 0.0
        %502 = vmatpush1.msra.mxu0 0.0
        %503 = vmatprep.subr.mxu0 0.0
        %504 = vmatpush1.msra.mxu0 0.0
        %505 = vmatprep.subr.mxu0 0.0
        %506 = vmatpush1.msra.mxu0 0.0
        %507 = vmatprep.subr.mxu0 0.0
        %508 = vmatpush1.msra.mxu0 0.0
        %509 = vmatprep.subr.mxu0 0.0
        %510 = vmatpush1.msra.mxu0 0.0
        %511 = vmatprep.subr.mxu0 0.0
        %512 = vmatpush1.msra.mxu0 0.0
        %513 = vmatprep.subr.mxu0 0.0
        %514 = vmatpush1.msra.mxu0 0.0
        %515 = vmatprep.subr.mxu0 0.0
        %516 = vmatpush1.msra.mxu0 0.0
        %517 = vmatprep.subr.mxu0 0.0
        %518 = vmatpush1.msra.mxu0 0.0
        %519 = vmatprep.subr.mxu0 0.0
        %520 = vmatpush1.msra.mxu0 %v495
        %521 = vmatprep.subr.mxu0 0.0
        %522 = vmatpush1.msra.mxu0 %v494
        %523 = vmatprep.subr.mxu0 0.0
        %524 = vmatpush1.msra.mxu0 %v493
        %525 = vmatprep.subr.mxu0 0.0
        %526 = vmatpush1.msra.mxu0 %v492
        %527 = vmatprep.subr.mxu0 0.0
        %528 = vmatpush1.msra.mxu0 %v491
        %529 = vmatprep.subr.mxu0 0.0
        %530 = vmatpush1.msra.mxu0 %v490
        %531 = vmatprep.subr.mxu0 0.0
        %532 = vmatpush2.msra.mxu0 0.0
        %533 = vmatprep.subr.mxu0 0.0
        %534 = vmatpush2.msra.mxu0 0.0
        %535 = vmatprep.subr.mxu0 0.0
        %536 = vmatpush2.msra.mxu0 0.0
        %537 = vmatprep.subr.mxu0 0.0
        %538 = vmatpush2.msra.mxu0 0.0
        %539 = vmatprep.subr.mxu0 0.0
        %540 = vmatpush2.msra.mxu0 0.0
        %541 = vmatprep.subr.mxu0 0.0
        %542 = vmatpush2.msra.mxu0 0.0
        %543 = vmatprep.subr.mxu0 0.0
        %544 = vmatpush2.msra.mxu0 0.0
        %545 = vmatprep.subr.mxu0 0.0
        %546 = vmatpush2.msra.mxu0 0.0
        %547 = vmatprep.subr.mxu0 0.0
        %548 = vmatpush2.msra.mxu0 0.0
        %549 = vmatprep.subr.mxu0 0.0
        %550 = vmatpush2.msra.mxu0 0.0
        %551 = vmatprep.subr.mxu0 0.0
        %552 = vmatpush2.msra.mxu0 0.0
        %553 = vmatprep.subr.mxu0 0.0
        %554 = vmatpush2.msra.mxu0 0.0
        %555 = vmatprep.subr.mxu0 0.0
        %556 = vmatpush2.msra.mxu0 0.0
        %557 = vmatprep.subr.mxu0 0.0
        %558 = vmatpush2.msra.mxu0 0.0
        %559 = vmatprep.subr.mxu0 0.0
        %560 = vmatpush2.msra.mxu0 0.0
        %561 = vmatprep.subr.mxu0 0.0
        %562 = vmatpush2.msra.mxu0 0.0
        %563 = vmatprep.mubr.f32.mxu0 0.0
        %564 = vmatmul.mubr.f32.gmra.mxu0 %v497
        %v565 = vpop.f32.mrf.mxu0
        %v566 = vadd.f32 0.0, %v565
        %v567 = vpop.f32.mrf.mxu0
        %568 = vdwg.mxu0
        %v569 = vld [vmem:[%s397] sm:$0xff]
        %v570 = vld [vmem:[%s397 + $0x8] sm:$0xff]
        %v571 = vld [vmem:[%s397 + $0x10] sm:$0xff]
        %v572 = vld [vmem:[%s397 + $0x18] sm:$0xff]
        %v573 = vld [vmem:[%s397 + $0x20] sm:$0xff]
        %v574 = vld [vmem:[%s397 + $0x28] sm:$0xff]
        %v575 = vld [vmem:[%s397 + $0x30] sm:$0xff]
        %v576 = vld [vmem:[%s397 + $0x38] sm:$0xff]
        %v577 = vld [vmem:[%s3] sm:$0xff]
        %vm578 = vcmask 64512
        %v580 = vsel %vm578, %v569, 0
        %v583 = vsel %vm578, %v570, 0
        %v586 = vsel %vm578, %v571, 0
        %v589 = vsel %vm578, %v572, 0
        %v592 = vsel %vm578, %v573, 0
        %v595 = vsel %vm578, %v574, 0
        %v598 = vsel %vm578, %v575, 0
        %v601 = vsel %vm578, %v576, 0
        %603 = vmatprep.subr.mxu0 0.0
        %604 = vmatpush1.msra.mxu0 0.0
        %605 = vmatprep.subr.mxu0 0.0
        %606 = vmatpush1.msra.mxu0 0.0
        %607 = vmatprep.subr.mxu0 0.0
        %608 = vmatpush1.msra.mxu0 0.0
        %609 = vmatprep.subr.mxu0 0.0
        %610 = vmatpush1.msra.mxu0 0.0
        %611 = vmatprep.subr.mxu0 0.0
        %612 = vmatpush1.msra.mxu0 0.0
        %613 = vmatprep.subr.mxu0 0.0
        %614 = vmatpush1.msra.mxu0 0.0
        %615 = vmatprep.subr.mxu0 0.0
        %616 = vmatpush1.msra.mxu0 0.0
        %617 = vmatprep.subr.mxu0 0.0
        %618 = vmatpush1.msra.mxu0 0.0
        %619 = vmatprep.subr.mxu0 0.0
        %620 = vmatpush1.msra.mxu0 0.0
        %621 = vmatprep.subr.mxu0 0.0
        %622 = vmatpush1.msra.mxu0 0.0
        %623 = vmatprep.subr.mxu0 0.0
        %624 = vmatpush1.msra.mxu0 0.0
        %625 = vmatprep.subr.mxu0 0.0
        %626 = vmatpush1.msra.mxu0 0.0
        %627 = vmatprep.subr.mxu0 0.0
        %628 = vmatpush1.msra.mxu0 0.0
        %629 = vmatprep.subr.mxu0 0.0
        %630 = vmatpush1.msra.mxu0 0.0
        %631 = vmatprep.subr.mxu0 0.0
        %632 = vmatpush1.msra.mxu0 0.0
        %633 = vmatprep.subr.mxu0 0.0
        %634 = vmatpush1.msra.mxu0 %v577
        %635 = vmatprep.subr.mxu0 0.0
        %636 = vmatpush2.msra.mxu0 0.0
        %637 = vmatprep.subr.mxu0 0.0
        %638 = vmatpush2.msra.mxu0 0.0
        %639 = vmatprep.subr.mxu0 0.0
        %640 = vmatpush2.msra.mxu0 0.0
        %641 = vmatprep.subr.mxu0 0.0
        %642 = vmatpush2.msra.mxu0 0.0
        %643 = vmatprep.subr.mxu0 0.0
        %644 = vmatpush2.msra.mxu0 0.0
        %645 = vmatprep.subr.mxu0 0.0
        %646 = vmatpush2.msra.mxu0 0.0
        %647 = vmatprep.subr.mxu0 0.0
        %648 = vmatpush2.msra.mxu0 0.0
        %649 = vmatprep.subr.mxu0 0.0
        %650 = vmatpush2.msra.mxu0 0.0
        %651 = vmatprep.subr.mxu0 0.0
        %652 = vmatpush2.msra.mxu0 0.0
        %653 = vmatprep.subr.mxu0 0.0
        %654 = vmatpush2.msra.mxu0 0.0
        %655 = vmatprep.subr.mxu0 0.0
        %656 = vmatpush2.msra.mxu0 0.0
        %657 = vmatprep.subr.mxu0 0.0
        %658 = vmatpush2.msra.mxu0 0.0
        %659 = vmatprep.subr.mxu0 0.0
        %660 = vmatpush2.msra.mxu0 0.0
        %661 = vmatprep.subr.mxu0 0.0
        %662 = vmatpush2.msra.mxu0 0.0
        %663 = vmatprep.subr.mxu0 0.0
        %664 = vmatpush2.msra.mxu0 0.0
        %665 = vmatprep.subr.mxu0 0.0
        %666 = vmatpush2.msra.mxu0 0.0
        %667 = vmatprep.mubr.f32.mxu0 0.0
        %668 = vmatmul.mubr.f32.gmra.mxu0 %v580
        %v669 = vpop.f32.mrf.mxu0
        %v670 = vadd.f32 0.0, %v669
        %v671 = vpop.f32.mrf.mxu0
        %672 = vmatprep.mubr.f32.mxu0 0.0
        %673 = vmatmul.mubr.f32.gmra.mxu0 %v583
        %v674 = vpop.f32.mrf.mxu0
        %v675 = vadd.f32 0.0, %v674
        %v676 = vpop.f32.mrf.mxu0
        %677 = vmatprep.mubr.f32.mxu0 0.0
        %678 = vmatmul.mubr.f32.gmra.mxu0 %v586
        %v679 = vpop.f32.mrf.mxu0
        %v680 = vadd.f32 0.0, %v679
        %v681 = vpop.f32.mrf.mxu0
        %682 = vmatprep.mubr.f32.mxu0 0.0
        %683 = vmatmul.mubr.f32.gmra.mxu0 %v589
        %v684 = vpop.f32.mrf.mxu0
        %v685 = vadd.f32 0.0, %v684
        %v686 = vpop.f32.mrf.mxu0
        %687 = vmatprep.mubr.f32.mxu0 0.0
        %688 = vmatmul.mubr.f32.gmra.mxu0 %v592
        %v689 = vpop.f32.mrf.mxu0
        %v690 = vadd.f32 0.0, %v689
        %v691 = vpop.f32.mrf.mxu0
        %692 = vmatprep.mubr.f32.mxu0 0.0
        %693 = vmatmul.mubr.f32.gmra.mxu0 %v595
        %v694 = vpop.f32.mrf.mxu0
        %v695 = vadd.f32 0.0, %v694
        %v696 = vpop.f32.mrf.mxu0
        %697 = vmatprep.mubr.f32.mxu0 0.0
        %698 = vmatmul.mubr.f32.gmra.mxu0 %v598
        %v699 = vpop.f32.mrf.mxu0
        %v700 = vadd.f32 0.0, %v699
        %v701 = vpop.f32.mrf.mxu0
        %702 = vmatprep.mubr.f32.mxu0 0.0
        %703 = vmatmul.mubr.f32.gmra.mxu0 %v601
        %v704 = vpop.f32.mrf.mxu0
        %v705 = vadd.f32 0.0, %v704
        %v706 = vpop.f32.mrf.mxu0
        %707 = vdwg.mxu0
        %v709 = vcombine.high %v566, %v566
        %v711 = vunpack.c.l.s4 1966171168
        %v712 = vunpack.c.0.s8 %v711
        %v713 = vlaneseq
        %v714 = vshrl.u32 %v713, 7
        %v715 = vsub.s32 %v712, %v714
        %v716 = vrot.slane %v566, %v715
        %v718 = vunpack.c.l.s4 1966171168
        %v719 = vunpack.c.0.s8 %v718
        %v720 = vlaneseq
        %v721 = vshrl.u32 %v720, 7
        %v722 = vsub.s32 %v719, %v721
        %v723 = vrot.slane %v709, %v722
        %v724 = vcombine.high %v716, %v716
        %v725 = vcombine.high %v723, %v723
        %v727 = vunpack.c.l.s4 1966171168
        %v728 = vunpack.c.0.s8 %v727
        %v729 = vlaneseq
        %v730 = vshrl.u32 %v729, 7
        %v731 = vsub.s32 %v728, %v730
        %v732 = vrot.slane %v716, %v731
        %v734 = vunpack.c.l.s4 1966171168
        %v735 = vunpack.c.0.s8 %v734
        %v736 = vlaneseq
        %v737 = vshrl.u32 %v736, 7
        %v738 = vsub.s32 %v735, %v737
        %v739 = vrot.slane %v723, %v738
        %v741 = vunpack.c.l.s4 1966171168
        %v742 = vunpack.c.0.s8 %v741
        %v743 = vlaneseq
        %v744 = vshrl.u32 %v743, 7
        %v745 = vsub.s32 %v742, %v744
        %v746 = vrot.slane %v724, %v745
        %v748 = vunpack.c.l.s4 1966171168
        %v749 = vunpack.c.0.s8 %v748
        %v750 = vlaneseq
        %v751 = vshrl.u32 %v750, 7
        %v752 = vsub.s32 %v749, %v751
        %v753 = vrot.slane %v725, %v752
        %v754 = vcombine.high %v732, %v732
        %v755 = vcombine.high %v739, %v739
        %v756 = vcombine.high %v746, %v746
        %v757 = vcombine.high %v753, %v753
        %v758 = vlaneseq
        %v759 = vshrl.u32 %v758, 7
        %v760 = vsub.s32 0, %v759
        %v761 = vrot.slane %v732, %v760
        %v762 = vlaneseq
        %v763 = vshrl.u32 %v762, 7
        %v764 = vsub.s32 0, %v763
        %v765 = vrot.slane %v746, %v764
        %v766 = vlaneseq
        %v767 = vshrl.u32 %v766, 7
        %v768 = vsub.s32 0, %v767
        %v769 = vrot.slane %v754, %v768
        %v770 = vlaneseq
        %v771 = vshrl.u32 %v770, 7
        %v772 = vsub.s32 0, %v771
        %v773 = vrot.slane %v756, %v772
        %v774 = vlaneseq
        %v775 = vshrl.u32 %v774, 7
        %v776 = vsub.s32 0, %v775
        %v777 = vrot.slane %v739, %v776
        %v778 = vlaneseq
        %v779 = vshrl.u32 %v778, 7
        %v780 = vsub.s32 0, %v779
        %v781 = vrot.slane %v753, %v780
        %v782 = vlaneseq
        %v783 = vshrl.u32 %v782, 7
        %v784 = vsub.s32 0, %v783
        %v785 = vrot.slane %v755, %v784
        %v786 = vlaneseq
        %v787 = vshrl.u32 %v786, 7
        %v788 = vsub.s32 0, %v787
        %v789 = vrot.slane %v757, %v788
        %v798 = vadd.f32 %v670, %v761
        %v799 = vadd.f32 %v675, %v765
        %v800 = vadd.f32 %v680, %v769
        %v801 = vadd.f32 %v685, %v773
        %v802 = vadd.f32 %v690, %v777
        %v803 = vadd.f32 %v695, %v781
        %v804 = vadd.f32 %v700, %v785
        %v805 = vadd.f32 %v705, %v789
        %v806 = vadd.f32 %v798, %v487
        %v807 = vadd.f32 %v799, %v487
        %v808 = vadd.f32 %v800, %v487
        %v809 = vadd.f32 %v801, %v487
        %v810 = vadd.f32 %v802, %v487
        %v811 = vadd.f32 %v803, %v487
        %v812 = vadd.f32 %v804, %v487
        %v813 = vadd.f32 %v805, %v487
        %v814 = vld [vmem:[%s6] sm:$0x1]
        %v816 = vlaneseq
        %v817 = vshrl.u32 %v816, 7
        %v818 = vsub.s32 0, %v817
        %v819 = vrot.slane %v814, %v818
        %v821 = vadd.f32 %v806, %v819
        %v822 = vadd.f32 %v807, %v819
        %v823 = vadd.f32 %v808, %v819
        %v824 = vadd.f32 %v809, %v819
        %v825 = vadd.f32 %v810, %v819
        %v826 = vadd.f32 %v811, %v819
        %v827 = vadd.f32 %v812, %v819
        %v828 = vadd.f32 %v813, %v819
        %vm829 = vcmp.gt.f32.partialorder %v821, 0.0
        %vm830 = vcmp.gt.f32.partialorder %v822, 0.0
        %vm831 = vcmp.gt.f32.partialorder %v823, 0.0
        %vm832 = vcmp.gt.f32.partialorder %v824, 0.0
        %vm833 = vcmp.gt.f32.partialorder %v825, 0.0
        %vm834 = vcmp.gt.f32.partialorder %v826, 0.0
        %vm835 = vcmp.gt.f32.partialorder %v827, 0.0
        %vm836 = vcmp.gt.f32.partialorder %v828, 0.0
        %v837 = vmul.f32 %v821, 0.01
        %v838 = vmul.f32 %v822, 0.01
        %v839 = vmul.f32 %v823, 0.01
        %v840 = vmul.f32 %v824, 0.01
        %v841 = vmul.f32 %v825, 0.01
        %v842 = vmul.f32 %v826, 0.01
        %v843 = vmul.f32 %v827, 0.01
        %v844 = vmul.f32 %v828, 0.01
        %v845 = vsel %vm829, %v821, %v837
        %v846 = vsel %vm830, %v822, %v838
        %v847 = vsel %vm831, %v823, %v839
        %v848 = vsel %vm832, %v824, %v840
        %v849 = vsel %vm833, %v825, %v841
        %v850 = vsel %vm834, %v826, %v842
        %v851 = vsel %vm835, %v827, %v843
        %v852 = vsel %vm836, %v828, %v844
        %v853 = vld [vmem:[%s405] sm:$0xff]
        %v854 = vlaneseq
        %v855 = vshrl.u32 %v854, 7
        %v856 = vsub.s32 0, %v855
        %v857 = vrot.slane %v853, %v856
        %859 = vbcast.lane.b32.xlu0 %v857, 256
        %v860 = vpop.permute.xlu0 %859
        %v861 = vlaneseq
        %v862 = vshrl.u32 %v861, 7
        %v863 = vsub.s32 1, %v862
        %v864 = vrot.slane %v853, %v863
        %866 = vbcast.lane.b32.xlu0 %v864, 256
        %v867 = vpop.permute.xlu0 %866
        %v868 = vlaneseq
        %v869 = vshrl.u32 %v868, 7
        %v870 = vsub.s32 2, %v869
        %v871 = vrot.slane %v853, %v870
        %873 = vbcast.lane.b32.xlu0 %v871, 256
        %v874 = vpop.permute.xlu0 %873
        %v875 = vlaneseq
        %v876 = vshrl.u32 %v875, 7
        %v877 = vsub.s32 3, %v876
        %v878 = vrot.slane %v853, %v877
        %880 = vbcast.lane.b32.xlu0 %v878, 256
        %v881 = vpop.permute.xlu0 %880
        %v882 = vlaneseq
        %v883 = vshrl.u32 %v882, 7
        %v884 = vsub.s32 4, %v883
        %v885 = vrot.slane %v853, %v884
        %887 = vbcast.lane.b32.xlu0 %v885, 256
        %v888 = vpop.permute.xlu0 %887
        %v889 = vlaneseq
        %v890 = vshrl.u32 %v889, 7
        %v891 = vsub.s32 5, %v890
        %v892 = vrot.slane %v853, %v891
        %894 = vbcast.lane.b32.xlu0 %v892, 256
        %v895 = vpop.permute.xlu0 %894
        %v896 = vlaneseq
        %v897 = vshrl.u32 %v896, 7
        %v898 = vsub.s32 6, %v897
        %v899 = vrot.slane %v853, %v898
        %901 = vbcast.lane.b32.xlu0 %v899, 256
        %v902 = vpop.permute.xlu0 %901
        %v903 = vlaneseq
        %v904 = vshrl.u32 %v903, 7
        %v905 = vsub.s32 7, %v904
        %v906 = vrot.slane %v853, %v905
        %908 = vbcast.lane.b32.xlu0 %v906, 256
        %v909 = vpop.permute.xlu0 %908
        %v910 = vmul.f32 %v845, %v860
        %v911 = vmul.f32 %v846, %v867
        %v912 = vmul.f32 %v847, %v874
        %v913 = vmul.f32 %v848, %v881
        %v914 = vmul.f32 %v849, %v888
        %v915 = vmul.f32 %v850, %v895
        %v916 = vmul.f32 %v851, %v902
        %v917 = vmul.f32 %v852, %v909
        %vm918 = vcmask 261120
        %v919 = vsel %vm918, %v910, 0.0
        %v920 = vrot.slane %v919, 4
        %v921 = vadd.f32 %v919, %v920
        %v922 = vrot.slane %v921, 2
        %v923 = vadd.f32 %v921, %v922
        %v924 = vrot.slane %v923, 1
        %v925 = vadd.f32 %v923, %v924
        %v926 = vsel %vm918, %v911, 0.0
        %v927 = vrot.slane %v926, 4
        %v928 = vadd.f32 %v926, %v927
        %v929 = vrot.slane %v928, 2
        %v930 = vadd.f32 %v928, %v929
        %v931 = vrot.slane %v930, 1
        %v932 = vadd.f32 %v930, %v931
        %v933 = vsel %vm918, %v912, 0.0
        %v934 = vrot.slane %v933, 4
        %v935 = vadd.f32 %v933, %v934
        %v936 = vrot.slane %v935, 2
        %v937 = vadd.f32 %v935, %v936
        %v938 = vrot.slane %v937, 1
        %v939 = vadd.f32 %v937, %v938
        %v940 = vsel %vm918, %v913, 0.0
        %v941 = vrot.slane %v940, 4
        %v942 = vadd.f32 %v940, %v941
        %v943 = vrot.slane %v942, 2
        %v944 = vadd.f32 %v942, %v943
        %v945 = vrot.slane %v944, 1
        %v946 = vadd.f32 %v944, %v945
        %v947 = vsel %vm918, %v914, 0.0
        %v948 = vrot.slane %v947, 4
        %v949 = vadd.f32 %v947, %v948
        %v950 = vrot.slane %v949, 2
        %v951 = vadd.f32 %v949, %v950
        %v952 = vrot.slane %v951, 1
        %v953 = vadd.f32 %v951, %v952
        %v954 = vsel %vm918, %v915, 0.0
        %v955 = vrot.slane %v954, 4
        %v956 = vadd.f32 %v954, %v955
        %v957 = vrot.slane %v956, 2
        %v958 = vadd.f32 %v956, %v957
        %v959 = vrot.slane %v958, 1
        %v960 = vadd.f32 %v958, %v959
        %v961 = vsel %vm918, %v916, 0.0
        %v962 = vrot.slane %v961, 4
        %v963 = vadd.f32 %v961, %v962
        %v964 = vrot.slane %v963, 2
        %v965 = vadd.f32 %v963, %v964
        %v966 = vrot.slane %v965, 1
        %v967 = vadd.f32 %v965, %v966
        %v968 = vsel %vm918, %v917, 0.0
        %v969 = vrot.slane %v968, 4
        %v970 = vadd.f32 %v968, %v969
        %v971 = vrot.slane %v970, 2
        %v972 = vadd.f32 %v970, %v971
        %v973 = vrot.slane %v972, 1
        %v974 = vadd.f32 %v972, %v973
        %v975 = vld [vmem:[%s7] sm:$0xff]
        %v976 = vld [vmem:[%s7 + $0x8] sm:$0xff]
        %v977 = vld [vmem:[%s7 + $0x10] sm:$0xff]
        %v978 = vld [vmem:[%s7 + $0x18] sm:$0xff]
        %vm987 = vcmask 1041409
        %v988 = vsel %vm987, %v932, %v925
        %vm989 = vcmask 1042434
        %v990 = vsel %vm989, %v939, %v988
        %vm991 = vcmask 1043459
        %v992 = vsel %vm991, %v946, %v990
        %vm993 = vcmask 1044484
        %v994 = vsel %vm993, %v953, %v992
        %vm995 = vcmask 1045509
        %v996 = vsel %vm995, %v960, %v994
        %vm997 = vcmask 1046534
        %v998 = vsel %vm997, %v967, %v996
        %vm999 = vcmask 1047559
        %v1000 = vsel %vm999, %v974, %v998
        %v1001 = vsel %vm918, %v1000, 0
        %1003 = vmatprep.subr.mxu0 0.0
        %1004 = vmatpush1.msra.mxu0 0.0
        %1005 = vmatprep.subr.mxu0 0.0
        %1006 = vmatpush1.msra.mxu0 0.0
        %1007 = vmatprep.subr.mxu0 0.0
        %1008 = vmatpush1.msra.mxu0 0.0
        %1009 = vmatprep.subr.mxu0 0.0
        %1010 = vmatpush1.msra.mxu0 0.0
        %1011 = vmatprep.subr.mxu0 0.0
        %1012 = vmatpush1.msra.mxu0 0.0
        %1013 = vmatprep.subr.mxu0 0.0
        %1014 = vmatpush1.msra.mxu0 0.0
        %1015 = vmatprep.subr.mxu0 0.0
        %1016 = vmatpush1.msra.mxu0 0.0
        %1017 = vmatprep.subr.mxu0 0.0
        %1018 = vmatpush1.msra.mxu0 0.0
        %1019 = vmatprep.subr.mxu0 0.0
        %1020 = vmatpush1.msra.mxu0 0.0
        %1021 = vmatprep.subr.mxu0 0.0
        %1022 = vmatpush1.msra.mxu0 0.0
        %1023 = vmatprep.subr.mxu0 0.0
        %1024 = vmatpush1.msra.mxu0 0.0
        %1025 = vmatprep.subr.mxu0 0.0
        %1026 = vmatpush1.msra.mxu0 0.0
        %1027 = vmatprep.subr.mxu0 0.0
        %1028 = vmatpush1.msra.mxu0 %v978
        %1029 = vmatprep.subr.mxu0 0.0
        %1030 = vmatpush1.msra.mxu0 %v977
        %1031 = vmatprep.subr.mxu0 0.0
        %1032 = vmatpush1.msra.mxu0 %v976
        %1033 = vmatprep.subr.mxu0 0.0
        %1034 = vmatpush1.msra.mxu0 %v975
        %1035 = vmatprep.subr.mxu0 0.0
        %1036 = vmatpush2.msra.mxu0 0.0
        %1037 = vmatprep.subr.mxu0 0.0
        %1038 = vmatpush2.msra.mxu0 0.0
        %1039 = vmatprep.subr.mxu0 0.0
        %1040 = vmatpush2.msra.mxu0 0.0
        %1041 = vmatprep.subr.mxu0 0.0
        %1042 = vmatpush2.msra.mxu0 0.0
        %1043 = vmatprep.subr.mxu0 0.0
        %1044 = vmatpush2.msra.mxu0 0.0
        %1045 = vmatprep.subr.mxu0 0.0
        %1046 = vmatpush2.msra.mxu0 0.0
        %1047 = vmatprep.subr.mxu0 0.0
        %1048 = vmatpush2.msra.mxu0 0.0
        %1049 = vmatprep.subr.mxu0 0.0
        %1050 = vmatpush2.msra.mxu0 0.0
        %1051 = vmatprep.subr.mxu0 0.0
        %1052 = vmatpush2.msra.mxu0 0.0
        %1053 = vmatprep.subr.mxu0 0.0
        %1054 = vmatpush2.msra.mxu0 0.0
        %1055 = vmatprep.subr.mxu0 0.0
        %1056 = vmatpush2.msra.mxu0 0.0
        %1057 = vmatprep.subr.mxu0 0.0
        %1058 = vmatpush2.msra.mxu0 0.0
        %1059 = vmatprep.subr.mxu0 0.0
        %1060 = vmatpush2.msra.mxu0 0.0
        %1061 = vmatprep.subr.mxu0 0.0
        %1062 = vmatpush2.msra.mxu0 0.0
        %1063 = vmatprep.subr.mxu0 0.0
        %1064 = vmatpush2.msra.mxu0 0.0
        %1065 = vmatprep.subr.mxu0 0.0
        %1066 = vmatpush2.msra.mxu0 0.0
        %1067 = vmatprep.mubr.f32.mxu0 0.0
        %1068 = vmatmul.mubr.f32.gmra.mxu0 %v1001
        %v1069 = vpop.f32.mrf.mxu0
        %v1070 = vadd.f32 0.0, %v1069
        %v1071 = vpop.f32.mrf.mxu0
        %1072 = vdwg.mxu0
        %1074 = vrot.lane.b32.xlu0 %v1070, 32
        %v1075 = vpop.permute.xlu0 %1074
        %v1077 = vadd.f32 %v566, %v1075
        %v1078 = vld [vmem:[%s8] sm:$0x1]
        %v1080 = vlaneseq
        %v1081 = vshrl.u32 %v1080, 7
        %v1082 = vsub.s32 0, %v1081
        %v1083 = vrot.slane %v1078, %v1082
        %1084 = vrot.lane.b32.xlu0 %v1083, 32
        %v1085 = vpop.permute.xlu0 %1084
        %v1087 = vadd.f32 %v1077, %v1085
        %1089 = vrot.lane.b32.xlu0 %v1087, 96
        %v1090 = vpop.permute.xlu0 %1089
        %1092 = vst.msk [vmem:[%s384] sm:$0xff] %vm918, %v1090
        %s1093 = sand.u32 %s253, 1
        %s1094 = scalar_lea.sflag [#allocation3], %s1093
        %s1095 = sand.u32 %s253, 1
        %s1096 = smul.addr %s1095, 8
        %s1097 = scalar_lea.vmem [#allocation2], %s1096
        // Predicated region
        $region57: #{graph_interaction_layer_4input.1} parent=55 // pred_check
          %p1098 = pneg %p263
        $region58: #{graph_interaction_layer_4input.1} parent=55 // pred_check_branch
          %1100 = sbr.rel (%p1098) target = $region60
        $region59: #{graph_interaction_layer_4input.1} parent=55 // pred_region
          %s1102 = ssub.s32 128, 128
          %1103 = vsyncadd %s1094, %s1102
          %s1104 = sadd.s32 %s28, %s27
          %s1105 = smul.addr %s1104, 128
          %s1106 = scalar_lea.hbm %s9, %s1105
          %s1108 = sshll.u32 %s1097, 4
          %s1109 = int_to_ptr.vmem [resolvable:$true] %s1108
          %1111 = dma.vmem_to_hbm [thread:$0]  %s1109, 128, %s1106, %s1094
        $region60: #{graph_interaction_layer_4input.1} parent=55 // pred_fallthru
          _
      $region56: #{graph_interaction_layer_4input.1} parent=5 // pred_fallthru
        _
      %p1112 = scmp.le.s32.totalorder 2, %s18
      // Predicated region
      $region61: #{graph_interaction_layer_4input.1} parent=5 // pred_check
        %p1113 = pneg %p1112
      $region62: #{graph_interaction_layer_4input.1} parent=5 // pred_check_branch
        %1115 = sbr.rel (%p1113) target = $region64
      $region63: #{graph_interaction_layer_4input.1} parent=5 // pred_region
        %s1116 = ssub.s32 %s18, 2
        // Predicated region
        $region65: #{graph_interaction_layer_4input.1} parent=63 // pred_check
          %p1117 = pneg %p269
        $region66: #{graph_interaction_layer_4input.1} parent=63 // pred_check_branch
          %1119 = sbr.rel (%p1117) target = $region68
        $region67: #{graph_interaction_layer_4input.1} parent=63 // pred_region
          %s1120 = sand.u32 %s254, 1
          %s1121 = scalar_lea.sflag [#allocation3], %s1120
          %s1122 = sand.u32 %s254, 1
          %s1123 = smul.addr %s1122, 8
          %s1124 = scalar_lea.vmem [#allocation2], %s1123
          %1125 = dma.done %s1121, 128
        $region68: #{graph_interaction_layer_4input.1} parent=63 // pred_fallthru
          _
      $region64: #{graph_interaction_layer_4input.1} parent=5 // pred_fallthru
        _
    $region6: #{graph_interaction_layer_4input.1} parent=1 // loop_footer
      %s22 = sadd.s32 1, %s18
    $region7: #{graph_interaction_layer_4input.1} parent=1 // loop_footer_branch
      %17 = sbr.rel target = $region3
    $region8: #{graph_interaction_layer_4input.1} parent=1 // loop_exit
      _
    %1126 = vsyncpa [#allocation3], 1
    %s1127 = scalar_lea.sflag [#allocation3], 1
    %1128 = vsyncpa %s1127, 1

</llo_original>
